<compile_context>
chip_gen: v5e
topology: v5e:2x2
jax: 0.10.0
libtpu: 0.0.40
codegen_flags: <defaults>
</compile_context>

<pallas_src>
import numpy as np

import jax
import jax.numpy as jnp
from jax import lax
from jax.experimental import pallas as pl
from jax.experimental.pallas import tpu as pltpu


# -----------------------------------------------------------------------------
# One-time cached capability / convention probe for pltpu.roll
# -----------------------------------------------------------------------------
_SHIFT_MODE = None  # ("roll", sign) or ("concat", 1)


def _shift_capability():
    """Cached probe: is pltpu.roll usable for lane + sublane shifts at these
    shapes, and does it follow np.roll convention (out[i] = in[i - shift])?
    Falls back to concat-of-slices shifts (functionally identical) otherwise.
    """
    global _SHIFT_MODE
    if _SHIFT_MODE is not None:
        return _SHIFT_MODE

    def probe(x_ref, lane_ref, row_ref):
        x = x_ref[...]
        lane_ref[...] = pltpu.roll(x, 4, axis=2)   # lane (minor) rotate
        row_ref[...] = pltpu.roll(x, 1, axis=1)    # sublane rotate

    x = jnp.arange(16 * 64, dtype=jnp.float32).reshape(1, 16, 64)
    try:
        lane_out, row_out = pl.pallas_call(
            probe,
            out_shape=(jax.ShapeDtypeStruct((1, 16, 64), jnp.float32),
                       jax.ShapeDtypeStruct((1, 16, 64), jnp.float32)),
        )(x)
        xh = np.asarray(jax.device_get(x))
        lo = np.asarray(jax.device_get(lane_out))
        ro = np.asarray(jax.device_get(row_out))
        if (np.array_equal(lo, np.roll(xh, 4, axis=2))
                and np.array_equal(ro, np.roll(xh, 1, axis=1))):
            _SHIFT_MODE = ("roll", 1)       # np.roll convention
        elif (np.array_equal(lo, np.roll(xh, -4, axis=2))
              and np.array_equal(ro, np.roll(xh, -1, axis=1))):
            _SHIFT_MODE = ("roll", -1)      # opposite convention
        else:
            _SHIFT_MODE = ("concat", 1)
    except Exception:  # scoped to the tiny probe only; fallback is functional
        _SHIFT_MODE = ("concat", 1)
    return _SHIFT_MODE


# -----------------------------------------------------------------------------
# Kernel
# -----------------------------------------------------------------------------
def _make_kernel(*, stride, h, w, ho, wo, cin, cout, proj,
                 shift_impl, roll_sign, use_bf16):
    use_roll = (shift_impl == "roll")

    def shift_rows(p, delta):
        # out[:, i, :] = p[:, i + delta, :]; out-of-range rows are zero.
        bt, rows, lanes = p.shape
        if use_roll:
            row = lax.broadcasted_iota(jnp.int32, (1, rows, 1), 1)
            keep = (row < rows - delta) if delta > 0 else (row >= -delta)
            amt = (-roll_sign * delta) % rows
            return jnp.where(keep, pltpu.roll(p, amt, axis=1), 0.0)
        zeros = jnp.zeros((bt, abs(delta), lanes), p.dtype)
        if delta > 0:
            return jnp.concatenate([p[:, delta:, :], zeros], axis=1)
        return jnp.concatenate([zeros, p[:, :delta, :]], axis=1)

    def shift_cols(p, dcol, chans):
        # lane-dense column shift: out[..., j*chans + c] = p[..., (j+dcol)*chans + c]
        bt, rows, lanes = p.shape
        d = dcol * chans
        if use_roll:
            lane = lax.broadcasted_iota(jnp.int32, (1, 1, lanes), 2)
            keep = (lane < lanes - d) if dcol > 0 else (lane >= -d)
            amt = (-roll_sign * d) % lanes
            return jnp.where(keep, pltpu.roll(p, amt, axis=2), 0.0)
        zeros = jnp.zeros((bt, rows, abs(d)), p.dtype)
        if dcol > 0:
            return jnp.concatenate([p[:, :, d:], zeros], axis=2)
        return jnp.concatenate([zeros, p[:, :, :d]], axis=2)

    def dwconv3x3(z, wt, chans):
        # 3x3 depthwise conv, stride 1, zero padding, on a lane-dense
        # (bt, R, Wd*chans) slab.  Nine full-lane VPU multiply-adds; the +-1
        # column / row shifts ride the XLU (roll) and a border mask.  No
        # zero-padded copy of z is ever built.
        cols = (shift_cols(z, -1, chans), z, shift_cols(z, +1, chans))
        acc = None
        for di in (-1, 0, 1):
            p = None
            for kj in range(3):                      # kj=0,1,2 <-> dj=-1,0,+1
                term = cols[kj] * wt[di + 1, kj, :]  # (Wd*chans,) broadcast
                p = term if p is None else p + term
            if di:
                p = shift_rows(p, di)
            acc = p if acc is None else acc + p
        return acc

    def kernel(x_ref, dw1_ref, w1_ref, b1_ref, dw2_ref, w2_ref, b2_ref, *rest):
        if proj:
            wsc_ref, bsc_ref, o_ref = rest
        else:
            (o_ref,) = rest

        x = x_ref[...].astype(jnp.float32)           # (bt, H, W*Cin), lane-dense
        bt = x.shape[0]

        def pw(a, w_ref):
            # 1x1 conv as a lane-dense MXU matmul against the host-built
            # W-blocked weight (BN scale and, for stride>1, the column
            # subsample are already folded in).
            nrows, ncols = a.shape[1], w_ref.shape[1]
            lhs = a.reshape(bt * nrows, a.shape[2])
            rhs = w_ref[...]
            if use_bf16:                             # only at real channel counts
                lhs = lhs.astype(jnp.bfloat16)
                rhs = rhs.astype(jnp.bfloat16)
            out = jnp.dot(lhs, rhs, preferred_element_type=jnp.float32)
            return out.reshape(bt, nrows, ncols)

        # ---- residual: DW3x3(s) -> PW1 -> BN1+ReLU -> DW3x3 -> PW2 -> BN2 ----
        z = dwconv3x3(x, dw1_ref[...].astype(jnp.float32), cin)
        y = pw(z, w1_ref)                            # (bt, H, Wo*Cout)
        if stride > 1:
            # Row subsample for strided blocks (column subsample is folded into
            # w1, so no strided lane gather).  Not exercised at stride=1.
            y = y[:, ::stride, :]
        y = jnp.maximum(y + b1_ref[...], 0.0)        # BN1 bias + ReLU
        z = dwconv3x3(y, dw2_ref[...].astype(jnp.float32), cout)
        y = pw(z, w2_ref) + b2_ref[...]              # BN2 (scale folded)

        # ---- shortcut ----
        if proj:
            sc = pw(x, wsc_ref)
            if stride > 1:
                sc = sc[:, ::stride, :]
            sc = sc + bsc_ref[...]
        else:
            sc = x                                   # identity: s==1, cin==cout

        # full-lane (Wo*Cout = multiple of 128 here) store
        o_ref[...] = jnp.maximum(y + sc, 0.0).astype(o_ref.dtype)

    return kernel


# -----------------------------------------------------------------------------
# Host-side weight preparation (tiny, done once per call)
# -----------------------------------------------------------------------------
def _prep_weights(params, *, w, wo, stride, proj):
    pw1 = params["pw1"] * params["s1"]               # BN1 scale folded
    pw2 = params["pw2"] * params["s2"]               # BN2 scale folded
    # Column-selection matrix: picks input column j*stride for output column j.
    sel = jnp.zeros((w, wo), jnp.float32)
    sel = sel.at[jnp.arange(wo) * stride, jnp.arange(wo)].set(1.0)
    w1 = jnp.kron(sel, pw1)                          # (W*Cin,  Wo*Cout)
    w2 = jnp.kron(jnp.eye(wo, dtype=jnp.float32), pw2)  # (Wo*Cout, Wo*Cout)
    dw1 = jnp.tile(params["dw1"], (1, 1, w))         # (3, 3, W*Cin)
    dw2 = jnp.tile(params["dw2"], (1, 1, wo))        # (3, 3, Wo*Cout)
    b1 = jnp.tile(params["b1"], (1, wo))             # (1, Wo*Cout)
    b2 = jnp.tile(params["b2"], (1, wo))
    weights = [dw1, w1, b1, dw2, w2, b2]
    if proj:
        weights += [jnp.kron(sel, params["pwsc"] * params["ssc"]),
                    jnp.tile(params["bsc"], (1, wo))]
    return weights


def _const_spec(a):
    # Grid-invariant (weight) input.  NOTE: at production weight sizes these
    # should be single-buffered (pipeline_mode=pl.Buffered(1)) or DMA'd once to
    # scratch; here the double-buffered copies cost < 0.5 MiB total.
    zeros = (0,) * a.ndim
    return pl.BlockSpec(a.shape, lambda b, _z=zeros: _z)


# -----------------------------------------------------------------------------
# Wrapper
# -----------------------------------------------------------------------------
def basic_block_pallas(x_nhwc, params, stride=1, batch_block=1):
    """ReLU(residual(x) + shortcut(x)) for one BasicBlock, NHWC layout."""
    n, h, w, cin = x_nhwc.shape
    cout = params["pw2"].shape[1]
    proj = (stride != 1) or (cin != cout)
    assert n % batch_block == 0
    # Keep grid length >= 2 where possible so v7x can shard the "parallel"
    # batch axis across its two TensorCores (cap batch_block at n // 2).
    ho = (h - 1) // stride + 1
    wo = (w - 1) // stride + 1

    weights = _prep_weights(params, w=w, wo=wo, stride=stride, proj=proj)
    x_ld = x_nhwc.reshape(n, h, w * cin)             # lane-dense view (free)

    shift_impl, roll_sign = _shift_capability()
    use_bf16 = min(cin, cout) >= 64                  # review: bf16 MXU gate

    kernel = _make_kernel(stride=stride, h=h, w=w, ho=ho, wo=wo, cin=cin,
                          cout=cout, proj=proj, shift_impl=shift_impl,
                          roll_sign=roll_sign, use_bf16=use_bf16)

    bt = batch_block
    out = pl.pallas_call(
        kernel,
        out_shape=jax.ShapeDtypeStruct((n, ho, wo * cout), x_nhwc.dtype),
        grid_spec=pltpu.PrefetchScalarGridSpec(
            num_scalar_prefetch=0,
            grid=(n // bt,),
            in_specs=[pl.BlockSpec((bt, h, w * cin), lambda b: (b, 0, 0))]
                     + [_const_spec(a) for a in weights],
            out_specs=pl.BlockSpec((bt, ho, wo * cout), lambda b: (b, 0, 0)),
        ),
        compiler_params=pltpu.CompilerParams(
            # Images are independent -> megacore-shardable on v7x.
            dimension_semantics=("parallel",),
            # Explicit VMEM budget (whole 16x16 image fits trivially; at real
            # ResNet sizes add an H-tile grid axis with a 2-row halo instead).
            vmem_limit_bytes=32 * 1024 * 1024,
        ),
    )(x_ld, *weights)

    return out.reshape(n, ho, wo, cout)              # cheap host-side unpack


# -----------------------------------------------------------------------------
# Parameters / reference
# -----------------------------------------------------------------------------
def fold_bn(gamma, beta, mean, var, eps=1e-5):
    scale = gamma / jnp.sqrt(var + eps)
    bias = beta - mean * scale
    return scale[None, :], bias[None, :]             # (1, C)


def init_params(key, cin, cout, stride):
    ks = jax.random.split(key, 11)
    p = {}
    p["dw1"] = 0.2 * jax.random.normal(ks[0], (3, 3, cin), jnp.float32)
    p["pw1"] = 0.2 * jax.random.normal(ks[1], (cin, cout), jnp.float32)
    g1 = 1.0 + 0.1 * jax.random.normal(ks[2], (cout,), jnp.float32)
    b1 = 0.1 * jax.random.normal(ks[3], (cout,), jnp.float32)
    p["s1"], p["b1"] = fold_bn(g1, b1, jnp.zeros(cout), jnp.ones(cout))
    p["dw2"] = 0.2 * jax.random.normal(ks[4], (3, 3, cout), jnp.float32)
    p["pw2"] = 0.2 * jax.random.normal(ks[5], (cout, cout), jnp.float32)
    g2 = 1.0 + 0.1 * jax.random.normal(ks[6], (cout,), jnp.float32)
    b2 = 0.1 * jax.random.normal(ks[7], (cout,), jnp.float32)
    p["s2"], p["b2"] = fold_bn(g2, b2, jnp.zeros(cout), jnp.ones(cout))
    if stride != 1 or cin != cout:
        p["pwsc"] = 0.2 * jax.random.normal(ks[8], (cin, cout), jnp.float32)
        gs = 1.0 + 0.1 * jax.random.normal(ks[9], (cout,), jnp.float32)
        bs = 0.1 * jax.random.normal(ks[10], (cout,), jnp.float32)
        p["ssc"], p["bsc"] = fold_bn(gs, bs, jnp.zeros(cout), jnp.ones(cout))
    return p


def basic_block_ref(x_nhwc, p, stride):
    """Pure-JAX reference (same eval-mode BN folding) for verification."""
    dn = ("NHWC", "HWIO", "NHWC")

    def dw(x, wgt, s):
        k = wgt[:, :, None, :]                       # (3,3,1,C)
        return lax.conv_general_dilated(x, k, (s, s), ((1, 1), (1, 1)),
                                        dimension_numbers=dn,
                                        feature_group_count=x.shape[-1])

    def pw(x, wgt, s=1):
        k = wgt[None, None]                          # (1,1,Cin,Cout)
        return lax.conv_general_dilated(x, k, (s, s), ((0, 0), (0, 0)),
                                        dimension_numbers=dn)

    y = pw(dw(x_nhwc, p["dw1"], stride), p["pw1"])
    y = jnp.maximum(y * p["s1"][0] + p["b1"][0], 0.0)
    y = pw(dw(y, p["dw2"], 1), p["pw2"])
    y = y * p["s2"][0] + p["b2"][0]
    if "pwsc" in p:
        sc = pw(x_nhwc, p["pwsc"], stride) * p["ssc"][0] + p["bsc"][0]
    else:
        sc = x_nhwc
    return jnp.maximum(y + sc, 0.0)


if __name__ == "__main__":
    key = jax.random.PRNGKey(0)
    kx1, kx2, kp1, kp2 = jax.random.split(key, 4)

    N, Cin, H, W = 2, 4, 16, 16

    # ---- case 1: projection shortcut (cin != cout), stride 1 ----
    Cout, stride = 8, 1
    x_nchw = jax.random.normal(kx1, (N, Cin, H, W), jnp.float32)
    x_nhwc = jnp.transpose(x_nchw, (0, 2, 3, 1))
    params = init_params(kp1, Cin, Cout, stride)

    out_nhwc = basic_block_pallas(x_nhwc, params, stride=stride)
    ref_nhwc = basic_block_ref(x_nhwc, params, stride)
    jax.block_until_ready(out_nhwc)
    assert out_nhwc.shape == (N, H, W, Cout)
    assert jnp.allclose(out_nhwc, ref_nhwc, atol=1e-4, rtol=1e-4), (
        float(jnp.max(jnp.abs(out_nhwc - ref_nhwc))))

    # ---- case 2: identity shortcut (stride 1, cin == cout) ----
    x2_nhwc = jnp.transpose(
        jax.random.normal(kx2, (N, Cout, H, W), jnp.float32), (0, 2, 3, 1))
    params_id = init_params(kp2, Cout, Cout, 1)
    out2 = basic_block_pallas(x2_nhwc, params_id, stride=1)
    ref2 = basic_block_ref(x2_nhwc, params_id, 1)
    jax.block_until_ready(out2)
    assert jnp.allclose(out2, ref2, atol=1e-4, rtol=1e-4), (
        float(jnp.max(jnp.abs(out2 - ref2))))

    # back to PyTorch's NCHW convention
    out_nchw = jnp.transpose(out_nhwc, (0, 3, 1, 2))
    jax.block_until_ready(out_nchw)
    print("KERNEL_OK")
</pallas_src>

<mosaic_0001>
module attributes {stable_mosaic.version = 11 : i64} {
  func.func @probe(%arg0: memref<1x16x64xf32, #tpu.memory_space<vmem>>, %arg1: memref<1x16x64xf32, #tpu.memory_space<vmem>>, %arg2: memref<1x16x64xf32, #tpu.memory_space<vmem>>) attributes {dimension_semantics = [], scalar_prefetch = 0 : i64, scratch_operands = 0 : i64, tpu.core_type = #tpu.core_type<tc>} {
    %c0 = arith.constant 0 : index
    %c0_0 = arith.constant 0 : index
    %c0_1 = arith.constant 0 : index
    %0 = vector.load %arg0[%c0, %c0_0, %c0_1] : memref<1x16x64xf32, #tpu.memory_space<vmem>>, vector<1x16x64xf32>
    %c4_i32 = arith.constant 4 : i32
    %1 = tpu.dynamic_rotate %0 by %c4_i32 dim 2 : vector<1x16x64xf32>, i32 -> vector<1x16x64xf32>
    %c0_2 = arith.constant 0 : index
    %c0_3 = arith.constant 0 : index
    %c0_4 = arith.constant 0 : index
    %2 = vector.load %arg1[%c0_2, %c0_3, %c0_4] : memref<1x16x64xf32, #tpu.memory_space<vmem>>, vector<1x16x64xf32>
    tpu.vector_store %arg1[%c0_2, %c0_3, %c0_4], %1 {strides = array<i32>} : memref<1x16x64xf32, #tpu.memory_space<vmem>>, vector<1x16x64xf32>,
    %c1_i32 = arith.constant 1 : i32
    %3 = tpu.dynamic_rotate %0 by %c1_i32 dim 1 : vector<1x16x64xf32>, i32 -> vector<1x16x64xf32>
    %c0_5 = arith.constant 0 : index
    %c0_6 = arith.constant 0 : index
    %c0_7 = arith.constant 0 : index
    %4 = vector.load %arg2[%c0_5, %c0_6, %c0_7] : memref<1x16x64xf32, #tpu.memory_space<vmem>>, vector<1x16x64xf32>
    tpu.vector_store %arg2[%c0_5, %c0_6, %c0_7], %3 {strides = array<i32>} : memref<1x16x64xf32, #tpu.memory_space<vmem>>, vector<1x16x64xf32>,
    return
  }
}

module attributes {stable_mosaic.version = 11 : i64} {
  func.func @kernel(%arg0: i32, %arg1: memref<1x16x64xf32, #tpu.memory_space<vmem>>, %arg2: memref<3x3x64xf32, #tpu.memory_space<vmem>>, %arg3: memref<64x128xf32, #tpu.memory_space<vmem>>, %arg4: memref<1x128xf32, #tpu.memory_space<vmem>>, %arg5: memref<3x3x128xf32, #tpu.memory_space<vmem>>, %arg6: memref<128x128xf32, #tpu.memory_space<vmem>>, %arg7: memref<1x128xf32, #tpu.memory_space<vmem>>, %arg8: memref<64x128xf32, #tpu.memory_space<vmem>>, %arg9: memref<1x128xf32, #tpu.memory_space<vmem>>, %arg10: memref<1x16x128xf32, #tpu.memory_space<vmem>>) attributes {dimension_semantics = [#tpu.dimension_semantics<parallel>], iteration_bounds = array<i64: 2>, scalar_prefetch = 0 : i64, scratch_operands = 0 : i64, tpu.core_type = #tpu.core_type<tc>, window_params = [{transform_indices = @transform_0, window_bounds = array<i64: 1, 16, 64>}, {pipeline_mode = #tpu.pipeline_mode<synchronous>, transform_indices = @transform_1, window_bounds = array<i64: 3, 3, 64>}, {pipeline_mode = #tpu.pipeline_mode<synchronous>, transform_indices = @transform_2, window_bounds = array<i64: 64, 128>}, {pipeline_mode = #tpu.pipeline_mode<synchronous>, transform_indices = @transform_3, window_bounds = array<i64: 1, 128>}, {pipeline_mode = #tpu.pipeline_mode<synchronous>, transform_indices = @transform_4, window_bounds = array<i64: 3, 3, 128>}, {pipeline_mode = #tpu.pipeline_mode<synchronous>, transform_indices = @transform_5, window_bounds = array<i64: 128, 128>}, {pipeline_mode = #tpu.pipeline_mode<synchronous>, transform_indices = @transform_6, window_bounds = array<i64: 1, 128>}, {pipeline_mode = #tpu.pipeline_mode<synchronous>, transform_indices = @transform_7, window_bounds = array<i64: 64, 128>}, {pipeline_mode = #tpu.pipeline_mode<synchronous>, transform_indices = @transform_8, window_bounds = array<i64: 1, 128>}, {transform_indices = @transform_9, window_bounds = array<i64: 1, 16, 128>}]} {
    %c0 = arith.constant 0 : index
    %c0_0 = arith.constant 0 : index
    %c0_1 = arith.constant 0 : index
    %0 = vector.load %arg1[%c0, %c0_0, %c0_1] : memref<1x16x64xf32, #tpu.memory_space<vmem>>, vector<1x16x64xf32>
    %c0_2 = arith.constant 0 : index
    %c0_3 = arith.constant 0 : index
    %c0_4 = arith.constant 0 : index
    %1 = vector.load %arg2[%c0_2, %c0_3, %c0_4] : memref<3x3x64xf32, #tpu.memory_space<vmem>>, vector<3x3x64xf32>
    %cst = arith.constant 0.000000e+00 : f32
    %2 = vector.broadcast %cst : f32 to vector<1x16x4xf32>
    %3 = vector.extract_strided_slice %0 {offsets = [0, 0, 0], sizes = [1, 16, 60], strides = [1, 1, 1]} : vector<1x16x64xf32> to vector<1x16x60xf32>
    %4 = tpu.concatenate %2, %3 in 2 : vector<1x16x4xf32>, vector<1x16x60xf32> -> vector<1x16x64xf32>
    %cst_5 = arith.constant 0.000000e+00 : f32
    %5 = vector.broadcast %cst_5 : f32 to vector<1x16x4xf32>
    %6 = vector.extract_strided_slice %0 {offsets = [0, 0, 4], sizes = [1, 16, 60], strides = [1, 1, 1]} : vector<1x16x64xf32> to vector<1x16x60xf32>
    %7 = tpu.concatenate %6, %5 in 2 : vector<1x16x60xf32>, vector<1x16x4xf32> -> vector<1x16x64xf32>
    %8 = vector.extract_strided_slice %1 {offsets = [0, 0, 0], sizes = [1, 1, 64], strides = [1, 1, 1]} : vector<3x3x64xf32> to vector<1x1x64xf32>
    %9 = vector.shape_cast %8 : vector<1x1x64xf32> to vector<64xf32>
    %10 = vector.shape_cast %9 : vector<64xf32> to vector<1x1x64xf32>
    %11 = vector.broadcast %10 : vector<1x1x64xf32> to vector<1x16x64xf32>
    %12 = arith.mulf %4, %11 : vector<1x16x64xf32>
    %13 = vector.extract_strided_slice %1 {offsets = [0, 1, 0], sizes = [1, 1, 64], strides = [1, 1, 1]} : vector<3x3x64xf32> to vector<1x1x64xf32>
    %14 = vector.shape_cast %13 : vector<1x1x64xf32> to vector<64xf32>
    %15 = vector.shape_cast %14 : vector<64xf32> to vector<1x1x64xf32>
    %16 = vector.broadcast %15 : vector<1x1x64xf32> to vector<1x16x64xf32>
    %17 = arith.mulf %0, %16 : vector<1x16x64xf32>
    %18 = arith.addf %12, %17 : vector<1x16x64xf32>
    %19 = vector.extract_strided_slice %1 {offsets = [0, 2, 0], sizes = [1, 1, 64], strides = [1, 1, 1]} : vector<3x3x64xf32> to vector<1x1x64xf32>
    %20 = vector.shape_cast %19 : vector<1x1x64xf32> to vector<64xf32>
    %21 = vector.shape_cast %20 : vector<64xf32> to vector<1x1x64xf32>
    %22 = vector.broadcast %21 : vector<1x1x64xf32> to vector<1x16x64xf32>
    %23 = arith.mulf %7, %22 : vector<1x16x64xf32>
    %24 = arith.addf %18, %23 : vector<1x16x64xf32>
    %cst_6 = arith.constant 0.000000e+00 : f32
    %25 = vector.broadcast %cst_6 : f32 to vector<1x1x64xf32>
    %26 = vector.extract_strided_slice %24 {offsets = [0, 0, 0], sizes = [1, 15, 64], strides = [1, 1, 1]} : vector<1x16x64xf32> to vector<1x15x64xf32>
    %27 = tpu.concatenate %25, %26 in 1 : vector<1x1x64xf32>, vector<1x15x64xf32> -> vector<1x16x64xf32>
    %28 = vector.extract_strided_slice %1 {offsets = [1, 0, 0], sizes = [1, 1, 64], strides = [1, 1, 1]} : vector<3x3x64xf32> to vector<1x1x64xf32>
    %29 = vector.shape_cast %28 : vector<1x1x64xf32> to vector<64xf32>
    %30 = vector.shape_cast %29 : vector<64xf32> to vector<1x1x64xf32>
    %31 = vector.broadcast %30 : vector<1x1x64xf32> to vector<1x16x64xf32>
    %32 = arith.mulf %4, %31 : vector<1x16x64xf32>
    %33 = vector.extract_strided_slice %1 {offsets = [1, 1, 0], sizes = [1, 1, 64], strides = [1, 1, 1]} : vector<3x3x64xf32> to vector<1x1x64xf32>
    %34 = vector.shape_cast %33 : vector<1x1x64xf32> to vector<64xf32>
    %35 = vector.shape_cast %34 : vector<64xf32> to vector<1x1x64xf32>
    %36 = vector.broadcast %35 : vector<1x1x64xf32> to vector<1x16x64xf32>
    %37 = arith.mulf %0, %36 : vector<1x16x64xf32>
    %38 = arith.addf %32, %37 : vector<1x16x64xf32>
    %39 = vector.extract_strided_slice %1 {offsets = [1, 2, 0], sizes = [1, 1, 64], strides = [1, 1, 1]} : vector<3x3x64xf32> to vector<1x1x64xf32>
    %40 = vector.shape_cast %39 : vector<1x1x64xf32> to vector<64xf32>
    %41 = vector.shape_cast %40 : vector<64xf32> to vector<1x1x64xf32>
    %42 = vector.broadcast %41 : vector<1x1x64xf32> to vector<1x16x64xf32>
    %43 = arith.mulf %7, %42 : vector<1x16x64xf32>
    %44 = arith.addf %38, %43 : vector<1x16x64xf32>
    %45 = arith.addf %27, %44 : vector<1x16x64xf32>
    %46 = vector.extract_strided_slice %1 {offsets = [2, 0, 0], sizes = [1, 1, 64], strides = [1, 1, 1]} : vector<3x3x64xf32> to vector<1x1x64xf32>
    %47 = vector.shape_cast %46 : vector<1x1x64xf32> to vector<64xf32>
    %48 = vector.shape_cast %47 : vector<64xf32> to vector<1x1x64xf32>
    %49 = vector.broadcast %48 : vector<1x1x64xf32> to vector<1x16x64xf32>
    %50 = arith.mulf %4, %49 : vector<1x16x64xf32>
    %51 = vector.extract_strided_slice %1 {offsets = [2, 1, 0], sizes = [1, 1, 64], strides = [1, 1, 1]} : vector<3x3x64xf32> to vector<1x1x64xf32>
    %52 = vector.shape_cast %51 : vector<1x1x64xf32> to vector<64xf32>
    %53 = vector.shape_cast %52 : vector<64xf32> to vector<1x1x64xf32>
    %54 = vector.broadcast %53 : vector<1x1x64xf32> to vector<1x16x64xf32>
    %55 = arith.mulf %0, %54 : vector<1x16x64xf32>
    %56 = arith.addf %50, %55 : vector<1x16x64xf32>
    %57 = vector.extract_strided_slice %1 {offsets = [2, 2, 0], sizes = [1, 1, 64], strides = [1, 1, 1]} : vector<3x3x64xf32> to vector<1x1x64xf32>
    %58 = vector.shape_cast %57 : vector<1x1x64xf32> to vector<64xf32>
    %59 = vector.shape_cast %58 : vector<64xf32> to vector<1x1x64xf32>
    %60 = vector.broadcast %59 : vector<1x1x64xf32> to vector<1x16x64xf32>
    %61 = arith.mulf %7, %60 : vector<1x16x64xf32>
    %62 = arith.addf %56, %61 : vector<1x16x64xf32>
    %cst_7 = arith.constant 0.000000e+00 : f32
    %63 = vector.broadcast %cst_7 : f32 to vector<1x1x64xf32>
    %64 = vector.extract_strided_slice %62 {offsets = [0, 1, 0], sizes = [1, 15, 64], strides = [1, 1, 1]} : vector<1x16x64xf32> to vector<1x15x64xf32>
    %65 = tpu.concatenate %64, %63 in 1 : vector<1x15x64xf32>, vector<1x1x64xf32> -> vector<1x16x64xf32>
    %66 = arith.addf %45, %65 : vector<1x16x64xf32>
    %67 = vector.shape_cast %66 : vector<1x16x64xf32> to vector<16x64xf32>
    %c0_8 = arith.constant 0 : index
    %c0_9 = arith.constant 0 : index
    %68 = vector.load %arg3[%c0_8, %c0_9] : memref<64x128xf32, #tpu.memory_space<vmem>>, vector<64x128xf32>
    %cst_10 = arith.constant dense<0.000000e+00> : vector<16x128xf32>
    %69 = tpu.matmul %67, %68, %cst_10 {dimension_numbers = #tpu.dot_dimension_numbers<[1], [0], [0], [1], [0, 0, 1, 1], [], []>} : vector<16x64xf32>, vector<64x128xf32>, vector<16x128xf32> -> vector<16x128xf32>
    %70 = vector.shape_cast %69 : vector<16x128xf32> to vector<1x16x128xf32>
    %c0_11 = arith.constant 0 : index
    %c0_12 = arith.constant 0 : index
    %71 = vector.load %arg4[%c0_11, %c0_12] : memref<1x128xf32, #tpu.memory_space<vmem>>, vector<1x128xf32>
    %72 = vector.shape_cast %71 : vector<1x128xf32> to vector<1x1x128xf32>
    %73 = vector.broadcast %72 : vector<1x1x128xf32> to vector<1x16x128xf32>
    %74 = arith.addf %70, %73 : vector<1x16x128xf32>
    %cst_13 = arith.constant 0.000000e+00 : f32
    %75 = vector.broadcast %cst_13 : f32 to vector<1x16x128xf32>
    %76 = arith.maximumf %74, %75 : vector<1x16x128xf32>
    %c0_14 = arith.constant 0 : index
    %c0_15 = arith.constant 0 : index
    %c0_16 = arith.constant 0 : index
    %77 = vector.load %arg5[%c0_14, %c0_15, %c0_16] : memref<3x3x128xf32, #tpu.memory_space<vmem>>, vector<3x3x128xf32>
    %cst_17 = arith.constant 0.000000e+00 : f32
    %78 = vector.broadcast %cst_17 : f32 to vector<1x16x8xf32>
    %79 = vector.extract_strided_slice %76 {offsets = [0, 0, 0], sizes = [1, 16, 120], strides = [1, 1, 1]} : vector<1x16x128xf32> to vector<1x16x120xf32>
    %80 = tpu.concatenate %78, %79 in 2 : vector<1x16x8xf32>, vector<1x16x120xf32> -> vector<1x16x128xf32>
    %cst_18 = arith.constant 0.000000e+00 : f32
    %81 = vector.broadcast %cst_18 : f32 to vector<1x16x8xf32>
    %82 = vector.extract_strided_slice %76 {offsets = [0, 0, 8], sizes = [1, 16, 120], strides = [1, 1, 1]} : vector<1x16x128xf32> to vector<1x16x120xf32>
    %83 = tpu.concatenate %82, %81 in 2 : vector<1x16x120xf32>, vector<1x16x8xf32> -> vector<1x16x128xf32>
    %84 = vector.extract_strided_slice %77 {offsets = [0, 0, 0], sizes = [1, 1, 128], strides = [1, 1, 1]} : vector<3x3x128xf32> to vector<1x1x128xf32>
    %85 = vector.shape_cast %84 : vector<1x1x128xf32> to vector<128xf32>
    %86 = vector.shape_cast %85 : vector<128xf32> to vector<1x1x128xf32>
    %87 = vector.broadcast %86 : vector<1x1x128xf32> to vector<1x16x128xf32>
    %88 = arith.mulf %80, %87 : vector<1x16x128xf32>
    %89 = vector.extract_strided_slice %77 {offsets = [0, 1, 0], sizes = [1, 1, 128], strides = [1, 1, 1]} : vector<3x3x128xf32> to vector<1x1x128xf32>
    %90 = vector.shape_cast %89 : vector<1x1x128xf32> to vector<128xf32>
    %91 = vector.shape_cast %90 : vector<128xf32> to vector<1x1x128xf32>
    %92 = vector.broadcast %91 : vector<1x1x128xf32> to vector<1x16x128xf32>
    %93 = arith.mulf %76, %92 : vector<1x16x128xf32>
    %94 = arith.addf %88, %93 : vector<1x16x128xf32>
    %95 = vector.extract_strided_slice %77 {offsets = [0, 2, 0], sizes = [1, 1, 128], strides = [1, 1, 1]} : vector<3x3x128xf32> to vector<1x1x128xf32>
    %96 = vector.shape_cast %95 : vector<1x1x128xf32> to vector<128xf32>
    %97 = vector.shape_cast %96 : vector<128xf32> to vector<1x1x128xf32>
    %98 = vector.broadcast %97 : vector<1x1x128xf32> to vector<1x16x128xf32>
    %99 = arith.mulf %83, %98 : vector<1x16x128xf32>
    %100 = arith.addf %94, %99 : vector<1x16x128xf32>
    %cst_19 = arith.constant 0.000000e+00 : f32
    %101 = vector.broadcast %cst_19 : f32 to vector<1x1x128xf32>
    %102 = vector.extract_strided_slice %100 {offsets = [0, 0, 0], sizes = [1, 15, 128], strides = [1, 1, 1]} : vector<1x16x128xf32> to vector<1x15x128xf32>
    %103 = tpu.concatenate %101, %102 in 1 : vector<1x1x128xf32>, vector<1x15x128xf32> -> vector<1x16x128xf32>
    %104 = vector.extract_strided_slice %77 {offsets = [1, 0, 0], sizes = [1, 1, 128], strides = [1, 1, 1]} : vector<3x3x128xf32> to vector<1x1x128xf32>
    %105 = vector.shape_cast %104 : vector<1x1x128xf32> to vector<128xf32>
    %106 = vector.shape_cast %105 : vector<128xf32> to vector<1x1x128xf32>
    %107 = vector.broadcast %106 : vector<1x1x128xf32> to vector<1x16x128xf32>
    %108 = arith.mulf %80, %107 : vector<1x16x128xf32>
    %109 = vector.extract_strided_slice %77 {offsets = [1, 1, 0], sizes = [1, 1, 128], strides = [1, 1, 1]} : vector<3x3x128xf32> to vector<1x1x128xf32>
    %110 = vector.shape_cast %109 : vector<1x1x128xf32> to vector<128xf32>
    %111 = vector.shape_cast %110 : vector<128xf32> to vector<1x1x128xf32>
    %112 = vector.broadcast %111 : vector<1x1x128xf32> to vector<1x16x128xf32>
    %113 = arith.mulf %76, %112 : vector<1x16x128xf32>
    %114 = arith.addf %108, %113 : vector<1x16x128xf32>
    %115 = vector.extract_strided_slice %77 {offsets = [1, 2, 0], sizes = [1, 1, 128], strides = [1, 1, 1]} : vector<3x3x128xf32> to vector<1x1x128xf32>
    %116 = vector.shape_cast %115 : vector<1x1x128xf32> to vector<128xf32>
    %117 = vector.shape_cast %116 : vector<128xf32> to vector<1x1x128xf32>
    %118 = vector.broadcast %117 : vector<1x1x128xf32> to vector<1x16x128xf32>
    %119 = arith.mulf %83, %118 : vector<1x16x128xf32>
    %120 = arith.addf %114, %119 : vector<1x16x128xf32>
    %121 = arith.addf %103, %120 : vector<1x16x128xf32>
    %122 = vector.extract_strided_slice %77 {offsets = [2, 0, 0], sizes = [1, 1, 128], strides = [1, 1, 1]} : vector<3x3x128xf32> to vector<1x1x128xf32>
    %123 = vector.shape_cast %122 : vector<1x1x128xf32> to vector<128xf32>
    %124 = vector.shape_cast %123 : vector<128xf32> to vector<1x1x128xf32>
    %125 = vector.broadcast %124 : vector<1x1x128xf32> to vector<1x16x128xf32>
    %126 = arith.mulf %80, %125 : vector<1x16x128xf32>
    %127 = vector.extract_strided_slice %77 {offsets = [2, 1, 0], sizes = [1, 1, 128], strides = [1, 1, 1]} : vector<3x3x128xf32> to vector<1x1x128xf32>
    %128 = vector.shape_cast %127 : vector<1x1x128xf32> to vector<128xf32>
    %129 = vector.shape_cast %128 : vector<128xf32> to vector<1x1x128xf32>
    %130 = vector.broadcast %129 : vector<1x1x128xf32> to vector<1x16x128xf32>
    %131 = arith.mulf %76, %130 : vector<1x16x128xf32>
    %132 = arith.addf %126, %131 : vector<1x16x128xf32>
    %133 = vector.extract_strided_slice %77 {offsets = [2, 2, 0], sizes = [1, 1, 128], strides = [1, 1, 1]} : vector<3x3x128xf32> to vector<1x1x128xf32>
    %134 = vector.shape_cast %133 : vector<1x1x128xf32> to vector<128xf32>
    %135 = vector.shape_cast %134 : vector<128xf32> to vector<1x1x128xf32>
    %136 = vector.broadcast %135 : vector<1x1x128xf32> to vector<1x16x128xf32>
    %137 = arith.mulf %83, %136 : vector<1x16x128xf32>
    %138 = arith.addf %132, %137 : vector<1x16x128xf32>
    %cst_20 = arith.constant 0.000000e+00 : f32
    %139 = vector.broadcast %cst_20 : f32 to vector<1x1x128xf32>
    %140 = vector.extract_strided_slice %138 {offsets = [0, 1, 0], sizes = [1, 15, 128], strides = [1, 1, 1]} : vector<1x16x128xf32> to vector<1x15x128xf32>
    %141 = tpu.concatenate %140, %139 in 1 : vector<1x15x128xf32>, vector<1x1x128xf32> -> vector<1x16x128xf32>
    %142 = arith.addf %121, %141 : vector<1x16x128xf32>
    %143 = vector.shape_cast %142 : vector<1x16x128xf32> to vector<16x128xf32>
    %c0_21 = arith.constant 0 : index
    %c0_22 = arith.constant 0 : index
    %144 = vector.load %arg6[%c0_21, %c0_22] : memref<128x128xf32, #tpu.memory_space<vmem>>, vector<128x128xf32>
    %cst_23 = arith.constant dense<0.000000e+00> : vector<16x128xf32>
    %145 = tpu.matmul %143, %144, %cst_23 {dimension_numbers = #tpu.dot_dimension_numbers<[1], [0], [0], [1], [0, 0, 1, 1], [], []>} : vector<16x128xf32>, vector<128x128xf32>, vector<16x128xf32> -> vector<16x128xf32>
    %146 = vector.shape_cast %145 : vector<16x128xf32> to vector<1x16x128xf32>
    %c0_24 = arith.constant 0 : index
    %c0_25 = arith.constant 0 : index
    %147 = vector.load %arg7[%c0_24, %c0_25] : memref<1x128xf32, #tpu.memory_space<vmem>>, vector<1x128xf32>
    %148 = vector.shape_cast %147 : vector<1x128xf32> to vector<1x1x128xf32>
    %149 = vector.broadcast %148 : vector<1x1x128xf32> to vector<1x16x128xf32>
    %150 = arith.addf %146, %149 : vector<1x16x128xf32>
    %151 = vector.shape_cast %0 : vector<1x16x64xf32> to vector<16x64xf32>
    %c0_26 = arith.constant 0 : index
    %c0_27 = arith.constant 0 : index
    %152 = vector.load %arg8[%c0_26, %c0_27] : memref<64x128xf32, #tpu.memory_space<vmem>>, vector<64x128xf32>
    %cst_28 = arith.constant dense<0.000000e+00> : vector<16x128xf32>
    %153 = tpu.matmul %151, %152, %cst_28 {dimension_numbers = #tpu.dot_dimension_numbers<[1], [0], [0], [1], [0, 0, 1, 1], [], []>} : vector<16x64xf32>, vector<64x128xf32>, vector<16x128xf32> -> vector<16x128xf32>
    %154 = vector.shape_cast %153 : vector<16x128xf32> to vector<1x16x128xf32>
    %c0_29 = arith.constant 0 : index
    %c0_30 = arith.constant 0 : index
    %155 = vector.load %arg9[%c0_29, %c0_30] : memref<1x128xf32, #tpu.memory_space<vmem>>, vector<1x128xf32>
    %156 = vector.shape_cast %155 : vector<1x128xf32> to vector<1x1x128xf32>
    %157 = vector.broadcast %156 : vector<1x1x128xf32> to vector<1x16x128xf32>
    %158 = arith.addf %154, %157 : vector<1x16x128xf32>
    %159 = arith.addf %150, %158 : vector<1x16x128xf32>
    %cst_31 = arith.constant 0.000000e+00 : f32
    %160 = vector.broadcast %cst_31 : f32 to vector<1x16x128xf32>
    %161 = arith.maximumf %159, %160 : vector<1x16x128xf32>
    %c0_32 = arith.constant 0 : index
    %c0_33 = arith.constant 0 : index
    %c0_34 = arith.constant 0 : index
    %162 = vector.load %arg10[%c0_32, %c0_33, %c0_34] : memref<1x16x128xf32, #tpu.memory_space<vmem>>, vector<1x16x128xf32>
    tpu.vector_store %arg10[%c0_32, %c0_33, %c0_34], %161 {strides = array<i32>} : memref<1x16x128xf32, #tpu.memory_space<vmem>>, vector<1x16x128xf32>,
    return
  }
  func.func @transform_0(%arg0: i32) -> (i32, i32, i32) {
    %c0_i32 = arith.constant 0 : i32
    %c0_i32_0 = arith.constant 0 : i32
    %c0_i32_1 = arith.constant 0 : i32
    return %arg0, %c0_i32, %c0_i32_0 : i32, i32, i32
  }
  func.func @transform_1(%arg0: i32) -> (i32, i32, i32) {
    %c0_i32 = arith.constant 0 : i32
    %c0_i32_0 = arith.constant 0 : i32
    %c0_i32_1 = arith.constant 0 : i32
    %c0_i32_2 = arith.constant 0 : i32
    return %c0_i32, %c0_i32_0, %c0_i32_1 : i32, i32, i32
  }
  func.func @transform_2(%arg0: i32) -> (i32, i32) {
    %c0_i32 = arith.constant 0 : i32
    %c0_i32_0 = arith.constant 0 : i32
    %c0_i32_1 = arith.constant 0 : i32
    return %c0_i32, %c0_i32_0 : i32, i32
  }
  func.func @transform_3(%arg0: i32) -> (i32, i32) {
    %c0_i32 = arith.constant 0 : i32
    %c0_i32_0 = arith.constant 0 : i32
    %c0_i32_1 = arith.constant 0 : i32
    return %c0_i32, %c0_i32_0 : i32, i32
  }
  func.func @transform_4(%arg0: i32) -> (i32, i32, i32) {
    %c0_i32 = arith.constant 0 : i32
    %c0_i32_0 = arith.constant 0 : i32
    %c0_i32_1 = arith.constant 0 : i32
    %c0_i32_2 = arith.constant 0 : i32
    return %c0_i32, %c0_i32_0, %c0_i32_1 : i32, i32, i32
  }
  func.func @transform_5(%arg0: i32) -> (i32, i32) {
    %c0_i32 = arith.constant 0 : i32
    %c0_i32_0 = arith.constant 0 : i32
    %c0_i32_1 = arith.constant 0 : i32
    return %c0_i32, %c0_i32_0 : i32, i32
  }
  func.func @transform_6(%arg0: i32) -> (i32, i32) {
    %c0_i32 = arith.constant 0 : i32
    %c0_i32_0 = arith.constant 0 : i32
    %c0_i32_1 = arith.constant 0 : i32
    return %c0_i32, %c0_i32_0 : i32, i32
  }
  func.func @transform_7(%arg0: i32) -> (i32, i32) {
    %c0_i32 = arith.constant 0 : i32
    %c0_i32_0 = arith.constant 0 : i32
    %c0_i32_1 = arith.constant 0 : i32
    return %c0_i32, %c0_i32_0 : i32, i32
  }
  func.func @transform_8(%arg0: i32) -> (i32, i32) {
    %c0_i32 = arith.constant 0 : i32
    %c0_i32_0 = arith.constant 0 : i32
    %c0_i32_1 = arith.constant 0 : i32
    return %c0_i32, %c0_i32_0 : i32, i32
  }
  func.func @transform_9(%arg0: i32) -> (i32, i32, i32) {
    %c0_i32 = arith.constant 0 : i32
    %c0_i32_0 = arith.constant 0 : i32
    %c0_i32_1 = arith.constant 0 : i32
    return %arg0, %c0_i32, %c0_i32_0 : i32, i32, i32
  }
}

</mosaic_0001>

<llo_original>
// kernel: tpu_custom_call.1
$region0: #{tpu_custom_call.1}
  #allocation0 [shape = 'u32[]', space=smem, size = 0x4, offset = 0x4, fixed_abs, tag = 'smem constant byte address 0x4 - core index']
  #allocation1 [shape = 'u32[72,128]{1,0:T(1,128)}', space=vmem, size = 0x9000, scoped, tag = 'internal scratch']
  %s0 = inlined_call_operand.hbm [shape: f32[1,16,64], index: 0, kind: input, shape index: {}]
  %s1 = inlined_call_operand.hbm [shape: f32[1,16,64], index: 1, kind: output, shape index: {0}]
  %s2 = inlined_call_operand.hbm [shape: f32[1,16,64], index: 2, kind: output, shape index: {1}]
  %3 = xla_tuple %s1, %s2
  %s4 = sld [smem:[#allocation0]]
  $region26: #{tpu_custom_call.1} parent=0
    _
  %s6 = ssub.s32 1, %s4
  %s7 = scalar_select 0, %s6, %s4
  $region1: #{tpu_custom_call.1} parent=0
    #allocation2 [shape = 'u8[8192]{0}', space=vmem, size = 0x2000, scoped, tag = 'input window, operand 0, single buffered']
    #allocation3 [shape = 's32[1]{0}', space=sflag, size = 0x4, scoped, tag = 'scoped memory for tpu_custom_call.1']
    #allocation4 [shape = 's32[1]{0}', space=sflag, size = 0x4, scoped, tag = 'scoped memory for tpu_custom_call.1']
    #allocation5 [shape = 'u8[8192]{0}', space=vmem, size = 0x2000, scoped, tag = 'output window, operand 0, single buffered']
    #allocation6 [shape = 'u8[8192]{0}', space=vmem, size = 0x2000, scoped, tag = 'output window, operand 1, single buffered']
    #allocation7 [shape = 's32[1]{0}', space=sflag, size = 0x4, scoped, tag = 'scoped memory for tpu_custom_call.1']
    %8 = vsyncpa [#allocation3], 0
    %9 = vsyncpa [#allocation4], 0
    %10 = vsyncpa [#allocation7], 0
    // Predicated region
    $region2: #{tpu_custom_call.1} parent=1 // pred_check
      _
    $region3: #{tpu_custom_call.1} parent=1 // pred_check_branch
      %12 = sbr.rel (0) target = $region5
    $region4: #{tpu_custom_call.1} parent=1 // pred_region
      %14 = vsyncadd [#allocation3], 0
      %s15 = sshll.u32 %s0, 4
      %s16 = int_to_ptr.hbm [resolvable:$true] %s15
      %s17 = sshll.u32 [#allocation2], 4
      %s18 = int_to_ptr.vmem [resolvable:$true] %s17
      %23 = dma.hbm_to_vmem [thread:$0]  %s16, 256, %s18, [#allocation3], 128, 128, 8
    $region5: #{tpu_custom_call.1} parent=1 // pred_fallthru
      _
    // Predicated region
    $region6: #{tpu_custom_call.1} parent=1 // pred_check
      _
    $region7: #{tpu_custom_call.1} parent=1 // pred_check_branch
      %25 = sbr.rel (0) target = $region9
    $region8: #{tpu_custom_call.1} parent=1 // pred_region
      %27 = dma.done [#allocation3], 256
    $region9: #{tpu_custom_call.1} parent=1 // pred_fallthru
      _
    %v28 = vld [vmem:[#allocation2] sm:$0xff]
    %v29 = vld [vmem:[#allocation2 + $0x8] sm:$0xff]
    %vm30 = vcmask 1048064
    %31 = vrot.lane.b32.xlu0 %v28, 64
    %v32 = vpop.permute.xlu0 %31
    %v33 = vsel %vm30, %v32, %v28
    %34 = vrot.lane.b32.xlu0 %v29, 64
    %v35 = vpop.permute.xlu0 %34
    %v36 = vsel %vm30, %v35, %v29
    %37 = vrot.lane.b32.xlu0 %v33, 64
    %v38 = vpop.permute.xlu0 %37
    %39 = vrot.lane.b32.xlu0 %v36, 64
    %v40 = vpop.permute.xlu0 %39
    %v41 = vsel %vm30, %v38, %v28
    %v42 = vsel %vm30, %v40, %v29
    %45 = vrot.lane.b32.xlu0 %v41, 68
    %v46 = vpop.permute.xlu0 %45
    %47 = vrot.lane.b32.xlu0 %v42, 68
    %v48 = vpop.permute.xlu0 %47
    %vm51 = vcmask 523264
    %52 = vst.msk [vmem:[#allocation5] sm:$0xff] %vm51, %v46
    %53 = vst.msk [vmem:[#allocation5 + $0x8] sm:$0xff] %vm51, %v48
    %v54 = vrot.slane %v28, 7
    %v55 = vrot.slane %v29, 7
    %v56 = vlaneseq
    %v57 = vshrl.u32 %v56, 7
    %vm58 = vcmp.lt.s32.totalorder %v57, 1
    %v59 = vsel %vm58, %v54, %v55
    %v60 = vsel %vm58, %v55, %v54
    %61 = vst.msk [vmem:[#allocation6] sm:$0xff] %vm51, %v60
    %62 = vst.msk [vmem:[#allocation6 + $0x8] sm:$0xff] %vm51, %v59
    // Predicated region
    $region10: #{tpu_custom_call.1} parent=1 // pred_check
      _
    $region11: #{tpu_custom_call.1} parent=1 // pred_check_branch
      %64 = sbr.rel (0) target = $region13
    $region12: #{tpu_custom_call.1} parent=1 // pred_region
      %66 = vsyncadd [#allocation4], 0
      %s67 = sshll.u32 [#allocation5], 4
      %s68 = int_to_ptr.vmem [resolvable:$true] %s67
      %s69 = sshll.u32 %s1, 4
      %s70 = int_to_ptr.hbm [resolvable:$true] %s69
      %75 = dma.vmem_to_hbm [thread:$0]  %s68, 256, %s70, [#allocation4], 128, 128, 8
    $region13: #{tpu_custom_call.1} parent=1 // pred_fallthru
      _
    // Predicated region
    $region14: #{tpu_custom_call.1} parent=1 // pred_check
      _
    $region15: #{tpu_custom_call.1} parent=1 // pred_check_branch
      %77 = sbr.rel (0) target = $region17
    $region16: #{tpu_custom_call.1} parent=1 // pred_region
      %79 = vsyncadd [#allocation7], 0
      %s80 = sshll.u32 [#allocation6], 4
      %s81 = int_to_ptr.vmem [resolvable:$true] %s80
      %s82 = sshll.u32 %s2, 4
      %s83 = int_to_ptr.hbm [resolvable:$true] %s82
      %88 = dma.vmem_to_hbm [thread:$0]  %s81, 256, %s83, [#allocation7], 128, 128, 8
    $region17: #{tpu_custom_call.1} parent=1 // pred_fallthru
      _
    // Predicated region
    $region18: #{tpu_custom_call.1} parent=1 // pred_check
      _
    $region19: #{tpu_custom_call.1} parent=1 // pred_check_branch
      %90 = sbr.rel (0) target = $region21
    $region20: #{tpu_custom_call.1} parent=1 // pred_region
      %92 = dma.done [#allocation4], 256
    $region21: #{tpu_custom_call.1} parent=1 // pred_fallthru
      _
    // Predicated region
    $region22: #{tpu_custom_call.1} parent=1 // pred_check
      _
    $region23: #{tpu_custom_call.1} parent=1 // pred_check_branch
      %94 = sbr.rel (0) target = $region25
    $region24: #{tpu_custom_call.1} parent=1 // pred_region
      %96 = dma.done [#allocation7], 256
    $region25: #{tpu_custom_call.1} parent=1 // pred_fallthru
      _
    %97 = vsyncpa [#allocation3], 1
    %98 = vsyncpa [#allocation4], 1
    %99 = vsyncpa [#allocation7], 1

// kernel: tpu_custom_call.1
$region0: #{tpu_custom_call.1}
  #allocation0 [shape = 'u32[]', space=smem, size = 0x4, offset = 0x4, fixed_abs, tag = 'smem constant byte address 0x4 - core index']
  #allocation1 [shape = 'u32[72,128]{1,0:T(1,128)}', space=vmem, size = 0x9000, scoped, tag = 'internal scratch']
  %s0 = inlined_call_operand.hbm [shape: f32[2,16,64], index: 0, kind: input, shape index: {}]
  %s1 = inlined_call_operand.hbm [shape: f32[3,3,64], index: 1, kind: input, shape index: {}]
  %s2 = inlined_call_operand.hbm [shape: f32[64,128], index: 2, kind: input, shape index: {}]
  %s3 = inlined_call_operand.vmem [shape: f32[1,128], index: 3, kind: input, shape index: {}]
  %s4 = inlined_call_operand.hbm [shape: f32[3,3,128], index: 4, kind: input, shape index: {}]
  %s5 = inlined_call_operand.hbm [shape: f32[128,128], index: 5, kind: input, shape index: {}]
  %s6 = inlined_call_operand.vmem [shape: f32[1,128], index: 6, kind: input, shape index: {}]
  %s7 = inlined_call_operand.hbm [shape: f32[64,128], index: 7, kind: input, shape index: {}]
  %s8 = inlined_call_operand.vmem [shape: f32[1,128], index: 8, kind: input, shape index: {}]
  %s9 = inlined_call_operand.hbm [shape: f32[2,16,128], index: 9, kind: output, shape index: {}]
  %s10 = sld [smem:[#allocation0]]
  $region93: #{tpu_custom_call.1} parent=0
    _
  %s12 = ssub.s32 1, %s10
  %s13 = scalar_select 0, %s12, %s10
  $region1: #{tpu_custom_call.1} parent=0
    #allocation2 [shape = 'u8[16384]{0}', space=vmem, size = 0x4000, scoped, tag = 'input window, operand 0']
    #allocation3 [shape = 's32[2]{0}', space=sflag, size = 0x8, scoped, tag = 'scoped memory for tpu_custom_call.1']
    #allocation4 [shape = 's32[2]{0}', space=sflag, size = 0x8, scoped, tag = 'scoped memory for tpu_custom_call.1']
    #allocation5 [shape = 'u8[6144]{0}', space=vmem, size = 0x1800, scoped, tag = 'input window, operand 1, single buffered']
    #allocation6 [shape = 's32[1]{0}', space=sflag, size = 0x4, scoped, tag = 'scoped memory for tpu_custom_call.1']
    #allocation7 [shape = 'u8[32768]{0}', space=vmem, size = 0x8000, scoped, tag = 'input window, operand 2, single buffered']
    #allocation8 [shape = 'u8[6144]{0}', space=vmem, size = 0x1800, scoped, tag = 'input window, operand 4, single buffered']
    #allocation9 [shape = 's32[1]{0}', space=sflag, size = 0x4, scoped, tag = 'scoped memory for tpu_custom_call.1']
    #allocation10 [shape = 'u8[65536]{0}', space=vmem, size = 0x10000, scoped, tag = 'input window, operand 5, single buffered']
    #allocation11 [shape = 'u8[32768]{0}', space=vmem, size = 0x8000, scoped, tag = 'input window, operand 7, single buffered']
    #allocation12 [shape = 's32[1]{0}', space=sflag, size = 0x4, scoped, tag = 'scoped memory for tpu_custom_call.1']
    #allocation13 [shape = 'u8[16384]{0}', space=vmem, size = 0x4000, scoped, tag = 'output window, operand 0']
    %14 = vsyncpa [#allocation3], 0
    %s15 = scalar_lea.sflag [#allocation3], 1
    %16 = vsyncpa %s15, 0
    %17 = vsyncpa [#allocation6], 0
    %18 = vsyncpa [#allocation9], 0
    %19 = vsyncpa [#allocation12], 0
    %20 = vsyncpa [#allocation4], 0
    %s21 = scalar_lea.sflag [#allocation4], 1
    %22 = vsyncpa %s21, 0
    loop: start=0, step=1, limit=4
    $region2: #{tpu_custom_call.1} parent=1 // loop_pre_header
      _
    $region3: #{tpu_custom_call.1} parent=1 // loop_header
      %s24 = sphi 0, %s28
      %p25 = scmp.ge.s32.totalorder %s24, 4
      %s34 = sphi 0, %s36
      %s37 = sphi 0, %s34
      %s38 = sphi 0, %s37
      %s54 = sphi 0, %s38
      %s58 = sphi 0, %s58
      %s60 = sphi 0, %s58
      %s61 = sphi 0, %s60
      %s75 = sphi 0, %s61
      %s79 = sphi 0, %s79
      %s81 = sphi 0, %s79
      %s82 = sphi 0, %s81
      %s96 = sphi 0, %s82
      %s100 = sphi 0, %s100
      %s102 = sphi 0, %s100
      %s103 = sphi 0, %s102
      %s117 = sphi 0, %s103
      %s121 = sphi 0, %s121
      %s123 = sphi 0, %s121
      %s124 = sphi 0, %s123
      %s138 = sphi 0, %s124
      %s142 = sphi 0, %s142
      %s144 = sphi 0, %s142
      %s145 = sphi 0, %s144
      %s159 = sphi 0, %s145
      %s163 = sphi 0, %s163
      %s165 = sphi 0, %s163
      %s166 = sphi 0, %s165
      %s180 = sphi 0, %s166
      %s184 = sphi 0, %s184
      %s186 = sphi 0, %s184
      %s187 = sphi 0, %s186
      %s201 = sphi 0, %s187
      %s205 = sphi 0, %s205
      %s207 = sphi 0, %s205
      %s208 = sphi 0, %s207
      %s222 = sphi 0, %s208
      %s228 = sphi 0, %s230
      %s231 = sphi 0, %s228
      %s232 = sphi 0, %s231
      %s248 = sphi 0, %s232
    $region4: #{tpu_custom_call.1} parent=1 // loop_header_branch
      %27 = sbr.rel (%p25) target = $region8
    $region5: #{tpu_custom_call.1} parent=1 // loop_body
      %s29 = ssub.s32 %s24, 1
      %s30 = ssub.s32 %s24, 2
      %s31 = sadd.s32 %s24, 1
      %s32 = ssub.s32 %s24, %s31
      %p33 = scmp.eq.s32.totalorder %s32, 0
      %s35 = sadd.s32 %s34, 1
      %s36 = scalar_select %p33, %s34, %s35
      %p39 = pneg %p33
      %p40 = scmp.eq.s32.totalorder %s24, 1
      %p41 = por %p39, %p40
      %p42 = scmp.ne.s32.totalorder %s34, %s37
      %p43 = scmp.eq.s32.totalorder %s24, 0
      %p44 = por %p42, %p43
      %p45 = scmp.ne.s32.totalorder %s34, %s37
      %p46 = scmp.eq.s32.totalorder %s29, 1
      %p47 = por %p45, %p46
      %p48 = scmp.ne.s32.totalorder %s37, %s38
      %p49 = scmp.eq.s32.totalorder %s29, 0
      %p50 = por %p48, %p49
      %p51 = scmp.ne.s32.totalorder %s37, %s38
      %p52 = scmp.eq.s32.totalorder %s30, 1
      %p53 = por %p51, %p52
      %p55 = scmp.ne.s32.totalorder %s38, %s54
      %p56 = scmp.eq.s32.totalorder %s30, 0
      %p57 = por %p55, %p56
      %s59 = sadd.s32 %s58, 1
      %p62 = scmp.eq.s32.totalorder %s24, 1
      %p63 = scmp.ne.s32.totalorder %s58, %s60
      %p64 = scmp.eq.s32.totalorder %s24, 0
      %p65 = por %p63, %p64
      %p66 = scmp.ne.s32.totalorder %s58, %s60
      %p67 = scmp.eq.s32.totalorder %s29, 1
      %p68 = por %p66, %p67
      %p69 = scmp.ne.s32.totalorder %s60, %s61
      %p70 = scmp.eq.s32.totalorder %s29, 0
      %p71 = por %p69, %p70
      %p72 = scmp.ne.s32.totalorder %s60, %s61
      %p73 = scmp.eq.s32.totalorder %s30, 1
      %p74 = por %p72, %p73
      %p76 = scmp.ne.s32.totalorder %s61, %s75
      %p77 = scmp.eq.s32.totalorder %s30, 0
      %p78 = por %p76, %p77
      %s80 = sadd.s32 %s79, 1
      %p83 = scmp.eq.s32.totalorder %s24, 1
      %p84 = scmp.ne.s32.totalorder %s79, %s81
      %p85 = scmp.eq.s32.totalorder %s24, 0
      %p86 = por %p84, %p85
      %p87 = scmp.ne.s32.totalorder %s79, %s81
      %p88 = scmp.eq.s32.totalorder %s29, 1
      %p89 = por %p87, %p88
      %p90 = scmp.ne.s32.totalorder %s81, %s82
      %p91 = scmp.eq.s32.totalorder %s29, 0
      %p92 = por %p90, %p91
      %p93 = scmp.ne.s32.totalorder %s81, %s82
      %p94 = scmp.eq.s32.totalorder %s30, 1
      %p95 = por %p93, %p94
      %p97 = scmp.ne.s32.totalorder %s82, %s96
      %p98 = scmp.eq.s32.totalorder %s30, 0
      %p99 = por %p97, %p98
      %s101 = sadd.s32 %s100, 1
      %p104 = scmp.eq.s32.totalorder %s24, 1
      %p105 = scmp.ne.s32.totalorder %s100, %s102
      %p106 = scmp.eq.s32.totalorder %s24, 0
      %p107 = por %p105, %p106
      %p108 = scmp.ne.s32.totalorder %s100, %s102
      %p109 = scmp.eq.s32.totalorder %s29, 1
      %p110 = por %p108, %p109
      %p111 = scmp.ne.s32.totalorder %s102, %s103
      %p112 = scmp.eq.s32.totalorder %s29, 0
      %p113 = por %p111, %p112
      %p114 = scmp.ne.s32.totalorder %s102, %s103
      %p115 = scmp.eq.s32.totalorder %s30, 1
      %p116 = por %p114, %p115
      %p118 = scmp.ne.s32.totalorder %s103, %s117
      %p119 = scmp.eq.s32.totalorder %s30, 0
      %p120 = por %p118, %p119
      %s122 = sadd.s32 %s121, 1
      %p125 = scmp.eq.s32.totalorder %s24, 1
      %p126 = scmp.ne.s32.totalorder %s121, %s123
      %p127 = scmp.eq.s32.totalorder %s24, 0
      %p128 = por %p126, %p127
      %p129 = scmp.ne.s32.totalorder %s121, %s123
      %p130 = scmp.eq.s32.totalorder %s29, 1
      %p131 = por %p129, %p130
      %p132 = scmp.ne.s32.totalorder %s123, %s124
      %p133 = scmp.eq.s32.totalorder %s29, 0
      %p134 = por %p132, %p133
      %p135 = scmp.ne.s32.totalorder %s123, %s124
      %p136 = scmp.eq.s32.totalorder %s30, 1
      %p137 = por %p135, %p136
      %p139 = scmp.ne.s32.totalorder %s124, %s138
      %p140 = scmp.eq.s32.totalorder %s30, 0
      %p141 = por %p139, %p140
      %s143 = sadd.s32 %s142, 1
      %p146 = scmp.eq.s32.totalorder %s24, 1
      %p147 = scmp.ne.s32.totalorder %s142, %s144
      %p148 = scmp.eq.s32.totalorder %s24, 0
      %p149 = por %p147, %p148
      %p150 = scmp.ne.s32.totalorder %s142, %s144
      %p151 = scmp.eq.s32.totalorder %s29, 1
      %p152 = por %p150, %p151
      %p153 = scmp.ne.s32.totalorder %s144, %s145
      %p154 = scmp.eq.s32.totalorder %s29, 0
      %p155 = por %p153, %p154
      %p156 = scmp.ne.s32.totalorder %s144, %s145
      %p157 = scmp.eq.s32.totalorder %s30, 1
      %p158 = por %p156, %p157
      %p160 = scmp.ne.s32.totalorder %s145, %s159
      %p161 = scmp.eq.s32.totalorder %s30, 0
      %p162 = por %p160, %p161
      %s164 = sadd.s32 %s163, 1
      %p167 = scmp.eq.s32.totalorder %s24, 1
      %p168 = scmp.ne.s32.totalorder %s163, %s165
      %p169 = scmp.eq.s32.totalorder %s24, 0
      %p170 = por %p168, %p169
      %p171 = scmp.ne.s32.totalorder %s163, %s165
      %p172 = scmp.eq.s32.totalorder %s29, 1
      %p173 = por %p171, %p172
      %p174 = scmp.ne.s32.totalorder %s165, %s166
      %p175 = scmp.eq.s32.totalorder %s29, 0
      %p176 = por %p174, %p175
      %p177 = scmp.ne.s32.totalorder %s165, %s166
      %p178 = scmp.eq.s32.totalorder %s30, 1
      %p179 = por %p177, %p178
      %p181 = scmp.ne.s32.totalorder %s166, %s180
      %p182 = scmp.eq.s32.totalorder %s30, 0
      %p183 = por %p181, %p182
      %s185 = sadd.s32 %s184, 1
      %p188 = scmp.eq.s32.totalorder %s24, 1
      %p189 = scmp.ne.s32.totalorder %s184, %s186
      %p190 = scmp.eq.s32.totalorder %s24, 0
      %p191 = por %p189, %p190
      %p192 = scmp.ne.s32.totalorder %s184, %s186
      %p193 = scmp.eq.s32.totalorder %s29, 1
      %p194 = por %p192, %p193
      %p195 = scmp.ne.s32.totalorder %s186, %s187
      %p196 = scmp.eq.s32.totalorder %s29, 0
      %p197 = por %p195, %p196
      %p198 = scmp.ne.s32.totalorder %s186, %s187
      %p199 = scmp.eq.s32.totalorder %s30, 1
      %p200 = por %p198, %p199
      %p202 = scmp.ne.s32.totalorder %s187, %s201
      %p203 = scmp.eq.s32.totalorder %s30, 0
      %p204 = por %p202, %p203
      %s206 = sadd.s32 %s205, 1
      %p209 = scmp.eq.s32.totalorder %s24, 1
      %p210 = scmp.ne.s32.totalorder %s205, %s207
      %p211 = scmp.eq.s32.totalorder %s24, 0
      %p212 = por %p210, %p211
      %p213 = scmp.ne.s32.totalorder %s205, %s207
      %p214 = scmp.eq.s32.totalorder %s29, 1
      %p215 = por %p213, %p214
      %p216 = scmp.ne.s32.totalorder %s207, %s208
      %p217 = scmp.eq.s32.totalorder %s29, 0
      %p218 = por %p216, %p217
      %p219 = scmp.ne.s32.totalorder %s207, %s208
      %p220 = scmp.eq.s32.totalorder %s30, 1
      %p221 = por %p219, %p220
      %p223 = scmp.ne.s32.totalorder %s208, %s222
      %p224 = scmp.eq.s32.totalorder %s30, 0
      %p225 = por %p223, %p224
      %s226 = ssub.s32 %s24, %s31
      %p227 = scmp.eq.s32.totalorder %s226, 0
      %s229 = sadd.s32 %s228, 1
      %s230 = scalar_select %p227, %s228, %s229
      %p233 = pneg %p227
      %p234 = scmp.eq.s32.totalorder %s24, 1
      %p235 = por %p233, %p234
      %p236 = scmp.ne.s32.totalorder %s228, %s231
      %p237 = scmp.eq.s32.totalorder %s24, 0
      %p238 = por %p236, %p237
      %p239 = scmp.ne.s32.totalorder %s228, %s231
      %p240 = scmp.eq.s32.totalorder %s29, 1
      %p241 = por %p239, %p240
      %p242 = scmp.ne.s32.totalorder %s231, %s232
      %p243 = scmp.eq.s32.totalorder %s29, 0
      %p244 = por %p242, %p243
      %p245 = scmp.ne.s32.totalorder %s231, %s232
      %p246 = scmp.eq.s32.totalorder %s30, 1
      %p247 = por %p245, %p246
      %p249 = scmp.ne.s32.totalorder %s232, %s248
      %p250 = scmp.eq.s32.totalorder %s30, 0
      %p251 = por %p249, %p250
      %p252 = scmp.le.s32.totalorder 1, %s24
      %p253 = scmp.lt.s32.totalorder %s24, 3
      %p254 = pnand %p252, %p253
      %p255 = pneg %p254
      // Predicated region
      $region9: #{tpu_custom_call.1} parent=5 // pred_check
        _
      $region10: #{tpu_custom_call.1} parent=5 // pred_check_branch
        %257 = sbr.rel (%p254) target = $region12
      $region11: #{tpu_custom_call.1} parent=5 // pred_region
        %s258 = ssub.s32 %s24, 1
        // Predicated region
        $region13: #{tpu_custom_call.1} parent=11 // pred_check
          %p259 = pneg %p71
        $region14: #{tpu_custom_call.1} parent=11 // pred_check_branch
          %261 = sbr.rel (%p259) target = $region16
        $region15: #{tpu_custom_call.1} parent=11 // pred_region
          %263 = vsyncadd [#allocation6], 0
          %s264 = sshll.u32 %s1, 4
          %s265 = int_to_ptr.hbm [resolvable:$true] %s264
          %s266 = sshll.u32 [#allocation5], 4
          %s267 = int_to_ptr.vmem [resolvable:$true] %s266
          %272 = dma.hbm_to_vmem [thread:$0]  %s265, 192, %s267, [#allocation6], 64, 64, 4
        $region16: #{tpu_custom_call.1} parent=11 // pred_fallthru
          _
        // Predicated region
        $region17: #{tpu_custom_call.1} parent=11 // pred_check
          %p273 = pneg %p92
        $region18: #{tpu_custom_call.1} parent=11 // pred_check_branch
          %275 = sbr.rel (%p273) target = $region20
        $region19: #{tpu_custom_call.1} parent=11 // pred_region
          %277 = vsyncadd [#allocation6], 0
          %s278 = sshll.u32 %s2, 4
          %s279 = int_to_ptr.hbm [resolvable:$true] %s278
          %s280 = sshll.u32 [#allocation7], 4
          %s281 = int_to_ptr.vmem [resolvable:$true] %s280
          %286 = dma.hbm_to_vmem [thread:$0]  %s279, 1024, %s281, [#allocation6], 128, 128, 8
        $region20: #{tpu_custom_call.1} parent=11 // pred_fallthru
          _
        // Predicated region
        $region21: #{tpu_custom_call.1} parent=11 // pred_check
          %p287 = pneg %p113
        $region22: #{tpu_custom_call.1} parent=11 // pred_check_branch
          %289 = sbr.rel (%p287) target = $region24
        $region23: #{tpu_custom_call.1} parent=11 // pred_region
          _
        $region24: #{tpu_custom_call.1} parent=11 // pred_fallthru
          _
        // Predicated region
        $region25: #{tpu_custom_call.1} parent=11 // pred_check
          %p290 = pneg %p134
        $region26: #{tpu_custom_call.1} parent=11 // pred_check_branch
          %292 = sbr.rel (%p290) target = $region28
        $region27: #{tpu_custom_call.1} parent=11 // pred_region
          %294 = vsyncadd [#allocation9], 0
          %s295 = sshll.u32 %s4, 4
          %s296 = int_to_ptr.hbm [resolvable:$true] %s295
          %s297 = sshll.u32 [#allocation8], 4
          %s298 = int_to_ptr.vmem [resolvable:$true] %s297
          %303 = dma.hbm_to_vmem [thread:$0]  %s296, 192, %s298, [#allocation9], 64, 64, 4
        $region28: #{tpu_custom_call.1} parent=11 // pred_fallthru
          _
        // Predicated region
        $region29: #{tpu_custom_call.1} parent=11 // pred_check
          %p304 = pneg %p155
        $region30: #{tpu_custom_call.1} parent=11 // pred_check_branch
          %306 = sbr.rel (%p304) target = $region32
        $region31: #{tpu_custom_call.1} parent=11 // pred_region
          %308 = vsyncadd [#allocation9], 0
          %s309 = sshll.u32 %s5, 4
          %s310 = int_to_ptr.hbm [resolvable:$true] %s309
          %s311 = sshll.u32 [#allocation10], 4
          %s312 = int_to_ptr.vmem [resolvable:$true] %s311
          %317 = dma.hbm_to_vmem [thread:$0]  %s310, 2048, %s312, [#allocation9], 128, 128, 8
        $region32: #{tpu_custom_call.1} parent=11 // pred_fallthru
          _
        // Predicated region
        $region33: #{tpu_custom_call.1} parent=11 // pred_check
          %p318 = pneg %p176
        $region34: #{tpu_custom_call.1} parent=11 // pred_check_branch
          %320 = sbr.rel (%p318) target = $region36
        $region35: #{tpu_custom_call.1} parent=11 // pred_region
          _
        $region36: #{tpu_custom_call.1} parent=11 // pred_fallthru
          _
        // Predicated region
        $region37: #{tpu_custom_call.1} parent=11 // pred_check
          %p321 = pneg %p197
        $region38: #{tpu_custom_call.1} parent=11 // pred_check_branch
          %323 = sbr.rel (%p321) target = $region40
        $region39: #{tpu_custom_call.1} parent=11 // pred_region
          %325 = vsyncadd [#allocation12], 0
          %s326 = sshll.u32 %s7, 4
          %s327 = int_to_ptr.hbm [resolvable:$true] %s326
          %s328 = sshll.u32 [#allocation11], 4
          %s329 = int_to_ptr.vmem [resolvable:$true] %s328
          %334 = dma.hbm_to_vmem [thread:$0]  %s327, 1024, %s329, [#allocation12], 128, 128, 8
        $region40: #{tpu_custom_call.1} parent=11 // pred_fallthru
          _
        // Predicated region
        $region41: #{tpu_custom_call.1} parent=11 // pred_check
          %p335 = pneg %p218
        $region42: #{tpu_custom_call.1} parent=11 // pred_check_branch
          %337 = sbr.rel (%p335) target = $region44
        $region43: #{tpu_custom_call.1} parent=11 // pred_region
          _
        $region44: #{tpu_custom_call.1} parent=11 // pred_fallthru
          _
      $region12: #{tpu_custom_call.1} parent=5 // pred_fallthru
        _
      %p338 = scmp.lt.s32.totalorder %s24, 2
      // Predicated region
      $region45: #{tpu_custom_call.1} parent=5 // pred_check
        %p339 = pneg %p338
      $region46: #{tpu_custom_call.1} parent=5 // pred_check_branch
        %341 = sbr.rel (%p339) target = $region48
      $region47: #{tpu_custom_call.1} parent=5 // pred_region
        // Predicated region
        $region49: #{tpu_custom_call.1} parent=47 // pred_check
          %p342 = pneg %p44
        $region50: #{tpu_custom_call.1} parent=47 // pred_check_branch
          %344 = sbr.rel (%p342) target = $region52
        $region51: #{tpu_custom_call.1} parent=47 // pred_region
          %s345 = sand.u32 %s34, 1
          %s346 = scalar_lea.sflag [#allocation3], %s345
          %s347 = sand.u32 %s34, 1
          %s348 = smul.addr %s347, 16
          %s349 = scalar_lea.vmem [#allocation2], %s348
          %351 = vsyncadd %s346, 0
          %s352 = smul.addr %s24, 2
          %s353 = smul.addr %s352, 8
          %s354 = scalar_lea.hbm %s0, %s353
          %s355 = sshll.u32 %s354, 4
          %s356 = int_to_ptr.hbm [resolvable:$true] %s355
          %s357 = sshll.u32 %s349, 4
          %s358 = int_to_ptr.vmem [resolvable:$true] %s357
          %363 = dma.hbm_to_vmem [thread:$0]  %s356, 256, %s358, %s346, 128, 128, 8
        $region52: #{tpu_custom_call.1} parent=47 // pred_fallthru
          _
      $region48: #{tpu_custom_call.1} parent=5 // pred_fallthru
        _
      %p364 = scmp.le.s32.totalorder 1, %s24
      %p365 = scmp.lt.s32.totalorder %s24, 3
      %p366 = pnand %p364, %p365
      %p367 = pneg %p366
      // Predicated region
      $region53: #{tpu_custom_call.1} parent=5 // pred_check
        _
      $region54: #{tpu_custom_call.1} parent=5 // pred_check_branch
        %369 = sbr.rel (%p366) target = $region56
      $region55: #{tpu_custom_call.1} parent=5 // pred_region
        %s370 = ssub.s32 %s24, 1
        %s371 = sand.u32 %s37, 1
        %s372 = scalar_lea.sflag [#allocation3], %s371
        %s373 = sand.u32 %s37, 1
        %s374 = smul.addr %s373, 16
        %s375 = scalar_lea.vmem [#allocation2], %s374
        // Predicated region
        $region57: #{tpu_custom_call.1} parent=55 // pred_check
          %p376 = pneg %p50
        $region58: #{tpu_custom_call.1} parent=55 // pred_check_branch
          %378 = sbr.rel (%p376) target = $region60
        $region59: #{tpu_custom_call.1} parent=55 // pred_region
          %380 = dma.done %s372, 256
        $region60: #{tpu_custom_call.1} parent=55 // pred_fallthru
          _
        // Predicated region
        $region61: #{tpu_custom_call.1} parent=55 // pred_check
          %p381 = pneg %p71
        $region62: #{tpu_custom_call.1} parent=55 // pred_check_branch
          %383 = sbr.rel (%p381) target = $region64
        $region63: #{tpu_custom_call.1} parent=55 // pred_region
          %385 = dma.done [#allocation6], 192
        $region64: #{tpu_custom_call.1} parent=55 // pred_fallthru
          _
        // Predicated region
        $region65: #{tpu_custom_call.1} parent=55 // pred_check
          %p386 = pneg %p92
        $region66: #{tpu_custom_call.1} parent=55 // pred_check_branch
          %388 = sbr.rel (%p386) target = $region68
        $region67: #{tpu_custom_call.1} parent=55 // pred_region
          %390 = dma.done [#allocation6], 1024
        $region68: #{tpu_custom_call.1} parent=55 // pred_fallthru
          _
        // Predicated region
        $region69: #{tpu_custom_call.1} parent=55 // pred_check
          %p391 = pneg %p134
        $region70: #{tpu_custom_call.1} parent=55 // pred_check_branch
          %393 = sbr.rel (%p391) target = $region72
        $region71: #{tpu_custom_call.1} parent=55 // pred_region
          %395 = dma.done [#allocation9], 192
        $region72: #{tpu_custom_call.1} parent=55 // pred_fallthru
          _
        // Predicated region
        $region73: #{tpu_custom_call.1} parent=55 // pred_check
          %p396 = pneg %p155
        $region74: #{tpu_custom_call.1} parent=55 // pred_check_branch
          %398 = sbr.rel (%p396) target = $region76
        $region75: #{tpu_custom_call.1} parent=55 // pred_region
          %400 = dma.done [#allocation9], 2048
        $region76: #{tpu_custom_call.1} parent=55 // pred_fallthru
          _
        // Predicated region
        $region77: #{tpu_custom_call.1} parent=55 // pred_check
          %p401 = pneg %p197
        $region78: #{tpu_custom_call.1} parent=55 // pred_check_branch
          %403 = sbr.rel (%p401) target = $region80
        $region79: #{tpu_custom_call.1} parent=55 // pred_region
          %405 = dma.done [#allocation12], 1024
        $region80: #{tpu_custom_call.1} parent=55 // pred_fallthru
          _
        %s406 = sand.u32 %s37, 1
        %s407 = scalar_lea.sflag [#allocation3], %s406
        %s408 = sand.u32 %s37, 1
        %s409 = smul.addr %s408, 16
        %s410 = scalar_lea.vmem [#allocation2], %s409
        %p411 = pneg %p50
        %p412 = pneg %p47
        %p413 = pneg %p71
        %p414 = pneg %p68
        %p415 = pneg %p92
        %p416 = pneg %p89
        %p417 = pneg %p113
        %p418 = pneg %p110
        %p419 = pneg %p134
        %p420 = pneg %p131
        %p421 = pneg %p155
        %p422 = pneg %p152
        %p423 = pneg %p176
        %p424 = pneg %p173
        %p425 = pneg %p197
        %p426 = pneg %p194
        %p427 = pneg %p218
        %p428 = pneg %p215
        %p429 = pneg %p244
        %p430 = pneg %p241
        %s431 = sand.u32 %s231, 1
        %s432 = scalar_lea.sflag [#allocation4], %s431
        %s433 = sand.u32 %s231, 1
        %s434 = smul.addr %s433, 16
        %s435 = scalar_lea.vmem [#allocation13], %s434
        %v436 = vld [vmem:[%s375] sm:$0xff]
        %v437 = vld [vmem:[%s375 + $0x8] sm:$0xff]
        %v438 = vld [vmem:[#allocation5] sm:$0x7]
        %v439 = vld [vmem:[#allocation5 + $0x4] sm:$0x7]
        %v440 = vld [vmem:[#allocation5 + $0x8] sm:$0x7]
        %443 = vrot.lane.b32.xlu0 %v436, 4
        %v444 = vpop.permute.xlu0 %443
        %445 = vrot.lane.b32.xlu0 %v437, 4
        %v446 = vpop.permute.xlu0 %445
        %vm449 = vcmask 31744
        %v450 = vsel %vm449, 0.0, %v444
        %v451 = vsel %vm449, 0.0, %v446
        %452 = vrot.lane.b32.xlu0 %v436, 124
        %v453 = vpop.permute.xlu0 %452
        %454 = vrot.lane.b32.xlu0 %v437, 124
        %v455 = vpop.permute.xlu0 %454
        %vm458 = vcmask 490496
        %v459 = vsel %vm458, %v453, 0.0
        %v460 = vsel %vm458, %v455, 0.0
        %v461 = vperm.slane %v438, 0
        %v462 = vmul.f32 %v450, %v461
        %v463 = vmul.f32 %v451, %v461
        %v464 = vperm.slane %v438, 1
        %v465 = vmul.f32 %v436, %v464
        %v466 = vmul.f32 %v437, %v464
        %v467 = vadd.f32 %v462, %v465
        %v468 = vadd.f32 %v463, %v466
        %v469 = vperm.slane %v438, 2
        %v470 = vmul.f32 %v459, %v469
        %v471 = vmul.f32 %v460, %v469
        %v472 = vadd.f32 %v467, %v470
        %v473 = vadd.f32 %v468, %v471
        %vm476 = vcmask 1040384
        %v477 = vrot.slane %v472, 7
        %v478 = vrot.slane %v473, 7
        %v479 = vsel %vm476, %v477, %v478
        %v482 = vsel %vm476, 0.0, %v477
        %v483 = vperm.slane %v439, 0
        %v484 = vmul.f32 %v450, %v483
        %v485 = vmul.f32 %v451, %v483
        %v486 = vperm.slane %v439, 1
        %v487 = vmul.f32 %v436, %v486
        %v488 = vmul.f32 %v437, %v486
        %v489 = vadd.f32 %v484, %v487
        %v490 = vadd.f32 %v485, %v488
        %v491 = vperm.slane %v439, 2
        %v492 = vmul.f32 %v459, %v491
        %v493 = vmul.f32 %v460, %v491
        %v494 = vadd.f32 %v489, %v492
        %v495 = vadd.f32 %v490, %v493
        %v496 = vadd.f32 %v482, %v494
        %v497 = vadd.f32 %v479, %v495
        %v498 = vperm.slane %v440, 0
        %v499 = vmul.f32 %v450, %v498
        %v500 = vmul.f32 %v451, %v498
        %v501 = vperm.slane %v440, 1
        %v502 = vmul.f32 %v436, %v501
        %v503 = vmul.f32 %v437, %v501
        %v504 = vadd.f32 %v499, %v502
        %v505 = vadd.f32 %v500, %v503
        %v506 = vperm.slane %v440, 2
        %v507 = vmul.f32 %v459, %v506
        %v508 = vmul.f32 %v460, %v506
        %v509 = vadd.f32 %v504, %v507
        %v510 = vadd.f32 %v505, %v508
        %vm513 = vcmask 1046528
        %v514 = vrot.slane %v509, 1
        %v515 = vrot.slane %v510, 1
        %v516 = vsel %vm513, %v514, %v515
        %v519 = vsel %vm513, %v515, 0.0
        %v520 = vadd.f32 %v496, %v516
        %v521 = vadd.f32 %v497, %v519
        %v522 = vld [vmem:[#allocation7] sm:$0xff]
        %v523 = vld [vmem:[#allocation7 + $0x8] sm:$0xff]
        %v524 = vld [vmem:[#allocation7 + $0x10] sm:$0xff]
        %v525 = vld [vmem:[#allocation7 + $0x18] sm:$0xff]
        %v526 = vld [vmem:[#allocation7 + $0x20] sm:$0xff]
        %v527 = vld [vmem:[#allocation7 + $0x28] sm:$0xff]
        %v528 = vld [vmem:[#allocation7 + $0x30] sm:$0xff]
        %v529 = vld [vmem:[#allocation7 + $0x38] sm:$0xff]
        %vm530 = vcmask 523264
        %v532 = vsel %vm530, %v520, 0
        %v535 = vsel %vm530, %v521, 0
        %537 = vmatpush.msra.mxu0 0.0
        %538 = vmatpush.msra.mxu0 0.0
        %539 = vmatpush.msra.mxu0 0.0
        %540 = vmatpush.msra.mxu0 0.0
        %541 = vmatpush.msra.mxu0 0.0
        %542 = vmatpush.msra.mxu0 0.0
        %543 = vmatpush.msra.mxu0 0.0
        %544 = vmatpush.msra.mxu0 0.0
        %545 = vmatpush.msra.mxu0 %v529
        %546 = vmatpush.msra.mxu0 %v528
        %547 = vmatpush.msra.mxu0 %v527
        %548 = vmatpush.msra.mxu0 %v526
        %549 = vmatpush.msra.mxu0 %v525
        %550 = vmatpush.msra.mxu0 %v524
        %551 = vmatpush.msra.mxu0 %v523
        %552 = vmatpush.msra.mxu0 %v522
        %553 = vmatmul.f32.gmra.mxu0 %v532
        %v554 = vpop.f32.mrf.mxu0
        %v555 = vadd.f32 0.0, %v554
        %556 = vmatmul.f32.gmra.mxu0 %v535
        %v557 = vpop.f32.mrf.mxu0
        %v558 = vadd.f32 0.0, %v557
        %559 = vdwg.mxu0
        %v560 = vld [vmem:[%s3] sm:$0x1]
        %v562 = vperm.slane %v560, 0
        %v564 = vadd.f32 %v555, %v562
        %v565 = vadd.f32 %v558, %v562
        %v566 = vmax.f32 %v564, 0.0
        %v567 = vmax.f32 %v565, 0.0
        %v568 = vld [vmem:[#allocation8] sm:$0x7]
        %v569 = vld [vmem:[#allocation8 + $0x4] sm:$0x7]
        %v570 = vld [vmem:[#allocation8 + $0x8] sm:$0x7]
        %573 = vrot.lane.b32.xlu0 %v566, 8
        %v574 = vpop.permute.xlu0 %573
        %575 = vrot.lane.b32.xlu0 %v567, 8
        %v576 = vpop.permute.xlu0 %575
        %vm579 = vcmask 64512
        %v580 = vsel %vm579, 0.0, %v574
        %v581 = vsel %vm579, 0.0, %v576
        %582 = vrot.lane.b32.xlu0 %v566, 120
        %v583 = vpop.permute.xlu0 %582
        %584 = vrot.lane.b32.xlu0 %v567, 120
        %v585 = vpop.permute.xlu0 %584
        %vm588 = vcmask 982016
        %v589 = vsel %vm588, %v583, 0.0
        %v590 = vsel %vm588, %v585, 0.0
        %v591 = vperm.slane %v568, 0
        %v592 = vmul.f32 %v580, %v591
        %v593 = vmul.f32 %v581, %v591
        %v594 = vperm.slane %v568, 1
        %v595 = vmul.f32 %v566, %v594
        %v596 = vmul.f32 %v567, %v594
        %v597 = vadd.f32 %v592, %v595
        %v598 = vadd.f32 %v593, %v596
        %v599 = vperm.slane %v568, 2
        %v600 = vmul.f32 %v589, %v599
        %v601 = vmul.f32 %v590, %v599
        %v602 = vadd.f32 %v597, %v600
        %v603 = vadd.f32 %v598, %v601
        %v606 = vrot.slane %v602, 7
        %v607 = vrot.slane %v603, 7
        %v608 = vsel %vm476, %v606, %v607
        %v611 = vsel %vm476, 0.0, %v606
        %v612 = vperm.slane %v569, 0
        %v613 = vmul.f32 %v580, %v612
        %v614 = vmul.f32 %v581, %v612
        %v615 = vperm.slane %v569, 1
        %v616 = vmul.f32 %v566, %v615
        %v617 = vmul.f32 %v567, %v615
        %v618 = vadd.f32 %v613, %v616
        %v619 = vadd.f32 %v614, %v617
        %v620 = vperm.slane %v569, 2
        %v621 = vmul.f32 %v589, %v620
        %v622 = vmul.f32 %v590, %v620
        %v623 = vadd.f32 %v618, %v621
        %v624 = vadd.f32 %v619, %v622
        %v625 = vadd.f32 %v611, %v623
        %v626 = vadd.f32 %v608, %v624
        %v627 = vperm.slane %v570, 0
        %v628 = vmul.f32 %v580, %v627
        %v629 = vmul.f32 %v581, %v627
        %v630 = vperm.slane %v570, 1
        %v631 = vmul.f32 %v566, %v630
        %v632 = vmul.f32 %v567, %v630
        %v633 = vadd.f32 %v628, %v631
        %v634 = vadd.f32 %v629, %v632
        %v635 = vperm.slane %v570, 2
        %v636 = vmul.f32 %v589, %v635
        %v637 = vmul.f32 %v590, %v635
        %v638 = vadd.f32 %v633, %v636
        %v639 = vadd.f32 %v634, %v637
        %v642 = vrot.slane %v638, 1
        %v643 = vrot.slane %v639, 1
        %v644 = vsel %vm513, %v642, %v643
        %v647 = vsel %vm513, %v643, 0.0
        %v648 = vadd.f32 %v625, %v644
        %v649 = vadd.f32 %v626, %v647
        %v650 = vld [vmem:[#allocation10] sm:$0xff]
        %v651 = vld [vmem:[#allocation10 + $0x8] sm:$0xff]
        %v652 = vld [vmem:[#allocation10 + $0x10] sm:$0xff]
        %v653 = vld [vmem:[#allocation10 + $0x18] sm:$0xff]
        %v654 = vld [vmem:[#allocation10 + $0x20] sm:$0xff]
        %v655 = vld [vmem:[#allocation10 + $0x28] sm:$0xff]
        %v656 = vld [vmem:[#allocation10 + $0x30] sm:$0xff]
        %v657 = vld [vmem:[#allocation10 + $0x38] sm:$0xff]
        %v658 = vld [vmem:[#allocation10 + $0x40] sm:$0xff]
        %v659 = vld [vmem:[#allocation10 + $0x48] sm:$0xff]
        %v660 = vld [vmem:[#allocation10 + $0x50] sm:$0xff]
        %v661 = vld [vmem:[#allocation10 + $0x58] sm:$0xff]
        %v662 = vld [vmem:[#allocation10 + $0x60] sm:$0xff]
        %v663 = vld [vmem:[#allocation10 + $0x68] sm:$0xff]
        %v664 = vld [vmem:[#allocation10 + $0x70] sm:$0xff]
        %v665 = vld [vmem:[#allocation10 + $0x78] sm:$0xff]
        %666 = vmatpush.msra.mxu0 %v665
        %667 = vmatpush.msra.mxu0 %v664
        %668 = vmatpush.msra.mxu0 %v663
        %669 = vmatpush.msra.mxu0 %v662
        %670 = vmatpush.msra.mxu0 %v661
        %671 = vmatpush.msra.mxu0 %v660
        %672 = vmatpush.msra.mxu0 %v659
        %673 = vmatpush.msra.mxu0 %v658
        %674 = vmatpush.msra.mxu0 %v657
        %675 = vmatpush.msra.mxu0 %v656
        %676 = vmatpush.msra.mxu0 %v655
        %677 = vmatpush.msra.mxu0 %v654
        %678 = vmatpush.msra.mxu0 %v653
        %679 = vmatpush.msra.mxu0 %v652
        %680 = vmatpush.msra.mxu0 %v651
        %681 = vmatpush.msra.mxu0 %v650
        %682 = vmatmul.f32.gmra.mxu0 %v648
        %v683 = vpop.f32.mrf.mxu0
        %v684 = vadd.f32 0.0, %v683
        %685 = vmatmul.f32.gmra.mxu0 %v649
        %v686 = vpop.f32.mrf.mxu0
        %v687 = vadd.f32 0.0, %v686
        %688 = vdwg.mxu0
        %v689 = vld [vmem:[%s6] sm:$0x1]
        %v691 = vperm.slane %v689, 0
        %v693 = vadd.f32 %v684, %v691
        %v694 = vadd.f32 %v687, %v691
        %v695 = vld [vmem:[#allocation11] sm:$0xff]
        %v696 = vld [vmem:[#allocation11 + $0x8] sm:$0xff]
        %v697 = vld [vmem:[#allocation11 + $0x10] sm:$0xff]
        %v698 = vld [vmem:[#allocation11 + $0x18] sm:$0xff]
        %v699 = vld [vmem:[#allocation11 + $0x20] sm:$0xff]
        %v700 = vld [vmem:[#allocation11 + $0x28] sm:$0xff]
        %v701 = vld [vmem:[#allocation11 + $0x30] sm:$0xff]
        %v702 = vld [vmem:[#allocation11 + $0x38] sm:$0xff]
        %v703 = vsel %vm530, %v436, 0
        %v705 = vsel %vm530, %v437, 0
        %707 = vmatpush.msra.mxu0 0.0
        %708 = vmatpush.msra.mxu0 0.0
        %709 = vmatpush.msra.mxu0 0.0
        %710 = vmatpush.msra.mxu0 0.0
        %711 = vmatpush.msra.mxu0 0.0
        %712 = vmatpush.msra.mxu0 0.0
        %713 = vmatpush.msra.mxu0 0.0
        %714 = vmatpush.msra.mxu0 0.0
        %715 = vmatpush.msra.mxu0 %v702
        %716 = vmatpush.msra.mxu0 %v701
        %717 = vmatpush.msra.mxu0 %v700
        %718 = vmatpush.msra.mxu0 %v699
        %719 = vmatpush.msra.mxu0 %v698
        %720 = vmatpush.msra.mxu0 %v697
        %721 = vmatpush.msra.mxu0 %v696
        %722 = vmatpush.msra.mxu0 %v695
        %723 = vmatmul.f32.gmra.mxu0 %v703
        %v724 = vpop.f32.mrf.mxu0
        %v725 = vadd.f32 0.0, %v724
        %726 = vmatmul.f32.gmra.mxu0 %v705
        %v727 = vpop.f32.mrf.mxu0
        %v728 = vadd.f32 0.0, %v727
        %729 = vdwg.mxu0
        %v730 = vld [vmem:[%s8] sm:$0x1]
        %v732 = vperm.slane %v730, 0
        %v734 = vadd.f32 %v725, %v732
        %v735 = vadd.f32 %v728, %v732
        %v736 = vadd.f32 %v693, %v734
        %v737 = vadd.f32 %v694, %v735
        %v738 = vmax.f32 %v736, 0.0
        %v739 = vmax.f32 %v737, 0.0
        %740 = vst [vmem:[%s435] sm:$0xff] %v738
        %741 = vst [vmem:[%s435 + $0x8] sm:$0xff] %v739
        %s742 = sand.u32 %s231, 1
        %s743 = scalar_lea.sflag [#allocation4], %s742
        %s744 = sand.u32 %s231, 1
        %s745 = smul.addr %s744, 16
        %s746 = scalar_lea.vmem [#allocation13], %s745
        // Predicated region
        $region81: #{tpu_custom_call.1} parent=55 // pred_check
          %p747 = pneg %p241
        $region82: #{tpu_custom_call.1} parent=55 // pred_check_branch
          %749 = sbr.rel (%p747) target = $region84
        $region83: #{tpu_custom_call.1} parent=55 // pred_region
          %751 = vsyncadd %s743, 0
          %s752 = smul.addr %s29, 2
          %s753 = smul.addr %s752, 8
          %s754 = scalar_lea.hbm %s9, %s753
          %s755 = sshll.u32 %s746, 4
          %s756 = int_to_ptr.vmem [resolvable:$true] %s755
          %s757 = sshll.u32 %s754, 4
          %s758 = int_to_ptr.hbm [resolvable:$true] %s757
          %763 = dma.vmem_to_hbm [thread:$0]  %s756, 256, %s758, %s743, 128, 128, 8
        $region84: #{tpu_custom_call.1} parent=55 // pred_fallthru
          _
      $region56: #{tpu_custom_call.1} parent=5 // pred_fallthru
        _
      %p764 = scmp.le.s32.totalorder 2, %s24
      // Predicated region
      $region85: #{tpu_custom_call.1} parent=5 // pred_check
        %p765 = pneg %p764
      $region86: #{tpu_custom_call.1} parent=5 // pred_check_branch
        %767 = sbr.rel (%p765) target = $region88
      $region87: #{tpu_custom_call.1} parent=5 // pred_region
        %s768 = ssub.s32 %s24, 2
        // Predicated region
        $region89: #{tpu_custom_call.1} parent=87 // pred_check
          %p769 = pneg %p247
        $region90: #{tpu_custom_call.1} parent=87 // pred_check_branch
          %771 = sbr.rel (%p769) target = $region92
        $region91: #{tpu_custom_call.1} parent=87 // pred_region
          %s772 = sand.u32 %s232, 1
          %s773 = scalar_lea.sflag [#allocation4], %s772
          %s774 = sand.u32 %s232, 1
          %s775 = smul.addr %s774, 16
          %s776 = scalar_lea.vmem [#allocation13], %s775
          %778 = dma.done %s773, 256
        $region92: #{tpu_custom_call.1} parent=87 // pred_fallthru
          _
      $region88: #{tpu_custom_call.1} parent=5 // pred_fallthru
        _
    $region6: #{tpu_custom_call.1} parent=1 // loop_footer
      %s28 = sadd.s32 1, %s24
    $region7: #{tpu_custom_call.1} parent=1 // loop_footer_branch
      %23 = sbr.rel target = $region3
    $region8: #{tpu_custom_call.1} parent=1 // loop_exit
      _
    %779 = vsyncpa [#allocation3], 1
    %s780 = scalar_lea.sflag [#allocation3], 1
    %781 = vsyncpa %s780, 1
    %782 = vsyncpa [#allocation6], 1
    %783 = vsyncpa [#allocation9], 1
    %784 = vsyncpa [#allocation12], 1
    %785 = vsyncpa [#allocation4], 1
    %s786 = scalar_lea.sflag [#allocation4], 1
    %787 = vsyncpa %s786, 1

</llo_original>
